<compile_context>
chip_gen: v5e
topology: v5e:2x2
jax: 0.10.0
libtpu: 0.0.40
codegen_flags: <defaults>
</compile_context>

<pallas_src>
import functools

import jax
import jax.numpy as jnp
from jax.experimental import pallas as pl
from jax.experimental.pallas import tpu as pltpu

HIDDEN1_UNITS = 300
HIDDEN2_UNITS = 600

_LANE = 128
_SUBLANE = 8
# Force >= 2 grid steps (for the 2 TensorCores on v7x) once the batch is at
# least this many rows; below that the extra grid step is not worth it.
_MULTI_CORE_MIN_ROWS = 512


def _round_up(n, m):
    return ((n + m - 1) // m) * m


H1_PAD = _round_up(HIDDEN1_UNITS, _LANE)   # 384
H2_PAD = _round_up(HIDDEN2_UNITS, _LANE)   # 640


def _has_bf16_vpu():
    """bf16 VALU exists on v6e/v7x; v5e (and older) lack it -> keep f32 epilogue."""
    try:
        kind = jax.devices()[0].device_kind.lower()
    except Exception:
        return False
    return not any(tag in kind for tag in ("v2", "v3", "v4", "v5"))


def value_net_kernel(x_ref, w1_ref, b1_ref, w2_ref, b2_ref, w3_ref, b3_ref,
                     out_ref, *, bf16_epilogue):
    # fc1: bf16 MXU operands, f32 accumulation.
    acc1 = jnp.dot(x_ref[...].astype(jnp.bfloat16), w1_ref[...],
                   preferred_element_type=jnp.float32)
    if bf16_epilogue:
        # bias + ReLU + downcast in one packed-bf16 pass (v6e/v7x bf16 VPU).
        h1 = jnp.maximum(acc1.astype(jnp.bfloat16)
                         + b1_ref[...].astype(jnp.bfloat16), 0.0)
    else:
        # f32 epilogue (v5e has no bf16 VALU), then downcast for the next matmul.
        h1 = jnp.maximum(acc1 + b1_ref[...], 0.0).astype(jnp.bfloat16)

    # fc2
    acc2 = jnp.dot(h1, w2_ref[...], preferred_element_type=jnp.float32)
    if bf16_epilogue:
        h2 = jnp.maximum(acc2.astype(jnp.bfloat16)
                         + b2_ref[...].astype(jnp.bfloat16), 0.0)
        h2 = h2.astype(jnp.float32)
    else:
        h2 = jnp.maximum(acc2 + b2_ref[...], 0.0)

    # value head: N=1 matmul as VPU multiply + lane reduction (XLU slot) against
    # a lane-dense (1, H2_PAD) f32 weight row.
    v = jnp.sum(h2 * w3_ref[...], axis=-1, keepdims=True)      # (tm, 1) f32
    out_ref[...] = (v + b3_ref[0, 0]).astype(out_ref.dtype)


def value_net_forward(x, params, *, block_m=1024, bf16_epilogue=None):
    """Fused ValueNet forward. x: (B, state_dim) f32 -> (B, 1) f32."""
    w1, b1, w2, b2, w3_row, b3 = params
    B, S = x.shape

    if bf16_epilogue is None:
        bf16_epilogue = _has_bf16_vpu()

    # Sublane-align the requested batch tile, then pick balanced tiles so batch
    # padding is at most 7 rows per tile.
    block_m = _round_up(max(block_m, _SUBLANE), _SUBLANE)
    grid_n = pl.cdiv(B, block_m)
    if B >= _MULTI_CORE_MIN_ROWS:
        # Keep >= 2 steps so the "parallel" axis can shard over v7x's 2 TCs.
        grid_n = max(grid_n, 2)
    tm = _round_up(pl.cdiv(B, grid_n), _SUBLANE)
    b_pad = grid_n * tm
    if b_pad != B:
        x = jnp.pad(x, ((0, b_pad - B), (0, 0)))
    grid = (grid_n,)

    def resident(shape):
        # Whole-array block with a constant index map: weights/biases stay
        # VMEM-resident across the batch loop (no re-DMA per grid step).
        return pl.BlockSpec(shape, lambda i: (0,) * len(shape))

    kernel = functools.partial(value_net_kernel, bf16_epilogue=bf16_epilogue)

    out = pl.pallas_call(
        kernel,
        out_shape=jax.ShapeDtypeStruct((b_pad, 1), jnp.float32),
        grid=grid,
        in_specs=[
            pl.BlockSpec((tm, S), lambda i: (i, 0)),            # x (batch-tiled)
            resident(w1.shape), resident(b1.shape),
            resident(w2.shape), resident(b2.shape),
            resident(w3_row.shape),
            pl.BlockSpec(memory_space=pltpu.MemorySpace.SMEM),  # b3 scalar
        ],
        out_specs=pl.BlockSpec((tm, 1), lambda i: (i, 0)),
        compiler_params=pltpu.CompilerParams(
            dimension_semantics=("parallel",)),
    )(x, w1, b1, w2, b2, w3_row, b3)

    return out[:B]


def value_net_reference(x, params, *, bf16_epilogue):
    """Plain-JAX reference following the exact kernel arithmetic path."""
    w1, b1, w2, b2, w3_row, b3 = params
    acc1 = jnp.dot(x.astype(jnp.bfloat16), w1, preferred_element_type=jnp.float32)
    if bf16_epilogue:
        h1 = jnp.maximum(acc1.astype(jnp.bfloat16) + b1.astype(jnp.bfloat16), 0.0)
    else:
        h1 = jnp.maximum(acc1 + b1, 0.0).astype(jnp.bfloat16)
    acc2 = jnp.dot(h1, w2, preferred_element_type=jnp.float32)
    if bf16_epilogue:
        h2 = jnp.maximum(acc2.astype(jnp.bfloat16) + b2.astype(jnp.bfloat16),
                         0.0).astype(jnp.float32)
    else:
        h2 = jnp.maximum(acc2 + b2, 0.0)
    return jnp.sum(h2 * w3_row, axis=-1, keepdims=True) + b3[0, 0]


def init_params(key, state_dim):
    """PyTorch-default init, then zero-pad hidden dims to lane multiples and
    cast the two big weights to bf16 (padding is zeros => numerics unchanged).

    nn.Linear default: U(-1/sqrt(fan_in), 1/sqrt(fan_in)) for weight & bias.
    value.weight overridden with N(0, 0.0001); value.bias keeps default init.
    """
    k = jax.random.split(key, 6)

    def linear_init(kw, kb, fan_in, fan_out):
        bound = 1.0 / jnp.sqrt(jnp.float32(fan_in))
        w = jax.random.uniform(kw, (fan_in, fan_out), jnp.float32, -bound, bound)
        b = jax.random.uniform(kb, (1, fan_out), jnp.float32, -bound, bound)
        return w, b

    w1, b1 = linear_init(k[0], k[1], state_dim, HIDDEN1_UNITS)
    w2, b2 = linear_init(k[2], k[3], HIDDEN1_UNITS, HIDDEN2_UNITS)
    # value layer: weight ~ N(0, std=0.0001), bias ~ default uniform
    w3 = 0.0001 * jax.random.normal(k[4], (HIDDEN2_UNITS, 1), jnp.float32)
    bound3 = 1.0 / jnp.sqrt(jnp.float32(HIDDEN2_UNITS))
    b3 = jax.random.uniform(k[5], (1, 1), jnp.float32, -bound3, bound3)

    # Lane-align hidden dims with zero padding (numerics unchanged).
    p1 = H1_PAD - HIDDEN1_UNITS
    p2 = H2_PAD - HIDDEN2_UNITS
    w1 = jnp.pad(w1, ((0, 0), (0, p1)))
    b1 = jnp.pad(b1, ((0, 0), (0, p1)))
    w2 = jnp.pad(w2, ((0, p1), (0, p2)))
    b2 = jnp.pad(b2, ((0, 0), (0, p2)))
    w3_row = jnp.pad(w3.T, ((0, 0), (0, p2)))   # (1, H2_PAD) lane-dense row, f32

    # bf16 weights for the two MXU matmuls; f32 accumulation happens in-kernel.
    return (w1.astype(jnp.bfloat16), b1,
            w2.astype(jnp.bfloat16), b2,
            w3_row, b3)


if __name__ == "__main__":
    key = jax.random.PRNGKey(0)
    key_p, key_x = jax.random.split(key)

    batch = 10           # exercises the pad-to-sublane (10 -> 16 rows) path
    state_dim = 32

    params = init_params(key_p, state_dim)
    x = jax.random.normal(key_x, (batch, state_dim), jnp.float32)

    bf16_epi = _has_bf16_vpu()
    value = jax.block_until_ready(
        value_net_forward(x, params, bf16_epilogue=bf16_epi))

    ref = value_net_reference(x, params, bf16_epilogue=bf16_epi)

    assert value.shape == (batch, 1)
    assert jnp.allclose(value, ref, atol=2e-3, rtol=1e-2), (
        float(jnp.max(jnp.abs(value - ref))))

    print("KERNEL_OK")
</pallas_src>

<mosaic_0001>
module attributes {stable_mosaic.version = 11 : i64} {
  func.func @value_net_kernel(%arg0: i32, %arg1: memref<16x32xf32, #tpu.memory_space<vmem>>, %arg2: memref<32x384xbf16, #tpu.memory_space<vmem>>, %arg3: memref<1x384xf32, #tpu.memory_space<vmem>>, %arg4: memref<384x640xbf16, #tpu.memory_space<vmem>>, %arg5: memref<1x640xf32, #tpu.memory_space<vmem>>, %arg6: memref<1x640xf32, #tpu.memory_space<vmem>>, %arg7: memref<1x1xf32, #tpu.memory_space<smem>>, %arg8: memref<16x1xf32, #tpu.memory_space<vmem>>) attributes {dimension_semantics = [#tpu.dimension_semantics<parallel>], iteration_bounds = array<i64: 1>, scalar_prefetch = 0 : i64, scratch_operands = 0 : i64, tpu.core_type = #tpu.core_type<tc>, window_params = [{transform_indices = @transform_0, window_bounds = array<i64: 16, 32>}, {pipeline_mode = #tpu.pipeline_mode<synchronous>, transform_indices = @transform_1, window_bounds = array<i64: 32, 384>}, {pipeline_mode = #tpu.pipeline_mode<synchronous>, transform_indices = @transform_2, window_bounds = array<i64: 1, 384>}, {pipeline_mode = #tpu.pipeline_mode<synchronous>, transform_indices = @transform_3, window_bounds = array<i64: 384, 640>}, {pipeline_mode = #tpu.pipeline_mode<synchronous>, transform_indices = @transform_4, window_bounds = array<i64: 1, 640>}, {pipeline_mode = #tpu.pipeline_mode<synchronous>, transform_indices = @transform_5, window_bounds = array<i64: 1, 640>}, {transform_indices = @transform_6, window_bounds = array<i64: 1, 1>}, {transform_indices = @transform_7, window_bounds = array<i64: 16, 1>}]} {
    %c0 = arith.constant 0 : index
    %c0_0 = arith.constant 0 : index
    %0 = vector.load %arg1[%c0, %c0_0] : memref<16x32xf32, #tpu.memory_space<vmem>>, vector<16x32xf32>
    %1 = arith.truncf %0 : vector<16x32xf32> to vector<16x32xbf16>
    %c0_1 = arith.constant 0 : index
    %c0_2 = arith.constant 0 : index
    %2 = vector.load %arg2[%c0_1, %c0_2] : memref<32x384xbf16, #tpu.memory_space<vmem>>, vector<32x384xbf16>
    %cst = arith.constant dense<0.000000e+00> : vector<16x384xf32>
    %3 = tpu.matmul %1, %2, %cst {dimension_numbers = #tpu.dot_dimension_numbers<[1], [0], [0], [1], [0, 0, 1, 1], [], []>} : vector<16x32xbf16>, vector<32x384xbf16>, vector<16x384xf32> -> vector<16x384xf32>
    %4 = arith.truncf %3 : vector<16x384xf32> to vector<16x384xbf16>
    %c0_3 = arith.constant 0 : index
    %c0_4 = arith.constant 0 : index
    %5 = vector.load %arg3[%c0_3, %c0_4] : memref<1x384xf32, #tpu.memory_space<vmem>>, vector<1x384xf32>
    %6 = arith.truncf %5 : vector<1x384xf32> to vector<1x384xbf16>
    %7 = vector.broadcast %6 : vector<1x384xbf16> to vector<16x384xbf16>
    %8 = arith.addf %4, %7 : vector<16x384xbf16>
    %cst_5 = arith.constant 0.000000e+00 : bf16
    %9 = vector.broadcast %cst_5 : bf16 to vector<16x384xbf16>
    %10 = arith.maximumf %8, %9 : vector<16x384xbf16>
    %c0_6 = arith.constant 0 : index
    %c0_7 = arith.constant 0 : index
    %11 = vector.load %arg4[%c0_6, %c0_7] : memref<384x640xbf16, #tpu.memory_space<vmem>>, vector<384x640xbf16>
    %cst_8 = arith.constant dense<0.000000e+00> : vector<16x640xf32>
    %12 = tpu.matmul %10, %11, %cst_8 {dimension_numbers = #tpu.dot_dimension_numbers<[1], [0], [0], [1], [0, 0, 1, 1], [], []>} : vector<16x384xbf16>, vector<384x640xbf16>, vector<16x640xf32> -> vector<16x640xf32>
    %13 = arith.truncf %12 : vector<16x640xf32> to vector<16x640xbf16>
    %c0_9 = arith.constant 0 : index
    %c0_10 = arith.constant 0 : index
    %14 = vector.load %arg5[%c0_9, %c0_10] : memref<1x640xf32, #tpu.memory_space<vmem>>, vector<1x640xf32>
    %15 = arith.truncf %14 : vector<1x640xf32> to vector<1x640xbf16>
    %16 = vector.broadcast %15 : vector<1x640xbf16> to vector<16x640xbf16>
    %17 = arith.addf %13, %16 : vector<16x640xbf16>
    %cst_11 = arith.constant 0.000000e+00 : bf16
    %18 = vector.broadcast %cst_11 : bf16 to vector<16x640xbf16>
    %19 = arith.maximumf %17, %18 : vector<16x640xbf16>
    %20 = arith.extf %19 : vector<16x640xbf16> to vector<16x640xf32>
    %c0_12 = arith.constant 0 : index
    %c0_13 = arith.constant 0 : index
    %21 = vector.load %arg6[%c0_12, %c0_13] : memref<1x640xf32, #tpu.memory_space<vmem>>, vector<1x640xf32>
    %22 = vector.broadcast %21 : vector<1x640xf32> to vector<16x640xf32>
    %23 = arith.mulf %20, %22 : vector<16x640xf32>
    %cst_14 = arith.constant dense<0.000000e+00> : vector<16xf32>
    %24 = vector.multi_reduction <add>, %23, %cst_14 [1] : vector<16x640xf32> to vector<16xf32>
    %25 = vector.shape_cast %24 : vector<16xf32> to vector<16x1xf32>
    %c0_15 = arith.constant 0 : index
    %c0_16 = arith.constant 0 : index
    %26 = memref.load %arg7[%c0_15, %c0_16] : memref<1x1xf32, #tpu.memory_space<smem>>
    %27 = vector.broadcast %26 : f32 to vector<16x1xf32>
    %28 = arith.addf %25, %27 : vector<16x1xf32>
    %c0_17 = arith.constant 0 : index
    %c0_18 = arith.constant 0 : index
    %29 = vector.load %arg8[%c0_17, %c0_18] : memref<16x1xf32, #tpu.memory_space<vmem>>, vector<16x1xf32>
    tpu.vector_store %arg8[%c0_17, %c0_18], %28 {strides = array<i32>} : memref<16x1xf32, #tpu.memory_space<vmem>>, vector<16x1xf32>,
    return
  }
  func.func @transform_0(%arg0: i32) -> (i32, i32) {
    %c0_i32 = arith.constant 0 : i32
    %c0_i32_0 = arith.constant 0 : i32
    return %arg0, %c0_i32 : i32, i32
  }
  func.func @transform_1(%arg0: i32) -> (i32, i32) {
    %c0_i32 = arith.constant 0 : i32
    %c0_i32_0 = arith.constant 0 : i32
    %c0_i32_1 = arith.constant 0 : i32
    return %c0_i32, %c0_i32_0 : i32, i32
  }
  func.func @transform_2(%arg0: i32) -> (i32, i32) {
    %c0_i32 = arith.constant 0 : i32
    %c0_i32_0 = arith.constant 0 : i32
    %c0_i32_1 = arith.constant 0 : i32
    return %c0_i32, %c0_i32_0 : i32, i32
  }
  func.func @transform_3(%arg0: i32) -> (i32, i32) {
    %c0_i32 = arith.constant 0 : i32
    %c0_i32_0 = arith.constant 0 : i32
    %c0_i32_1 = arith.constant 0 : i32
    return %c0_i32, %c0_i32_0 : i32, i32
  }
  func.func @transform_4(%arg0: i32) -> (i32, i32) {
    %c0_i32 = arith.constant 0 : i32
    %c0_i32_0 = arith.constant 0 : i32
    %c0_i32_1 = arith.constant 0 : i32
    return %c0_i32, %c0_i32_0 : i32, i32
  }
  func.func @transform_5(%arg0: i32) -> (i32, i32) {
    %c0_i32 = arith.constant 0 : i32
    %c0_i32_0 = arith.constant 0 : i32
    %c0_i32_1 = arith.constant 0 : i32
    return %c0_i32, %c0_i32_0 : i32, i32
  }
  func.func @transform_6(%arg0: i32) -> (i32, i32) {
    %c0_i32 = arith.constant 0 : i32
    %c0_i32_0 = arith.constant 0 : i32
    %c0_i32_1 = arith.constant 0 : i32
    return %c0_i32, %c0_i32_0 : i32, i32
  }
  func.func @transform_7(%arg0: i32) -> (i32, i32) {
    %c0_i32 = arith.constant 0 : i32
    %c0_i32_0 = arith.constant 0 : i32
    return %arg0, %c0_i32 : i32, i32
  }
}

</mosaic_0001>

<llo_original>
// kernel: tpu_custom_call.1
$region0: #{tpu_custom_call.1}
  #allocation0 [shape = 'u32[]', space=smem, size = 0x4, offset = 0x4, fixed_abs, tag = 'smem constant byte address 0x4 - core index']
  #allocation1 [shape = 'u32[72,128]{1,0:T(1,128)}', space=vmem, size = 0x9000, scoped, tag = 'internal scratch']
  #allocation2 [shape = 'f32[1,1]{1,0:T(1,128)S(6)}', space=smem, size = 0x200, scoped, tag = 'scoped memory for tpu_custom_call.1']
  %s0 = inlined_call_operand.hbm [shape: f32[16,32], index: 0, kind: input, shape index: {}]
  %s1 = inlined_call_operand.hbm [shape: bf16[32,384], index: 1, kind: input, shape index: {}]
  %s2 = inlined_call_operand.hbm [shape: f32[1,384], index: 2, kind: input, shape index: {}]
  %s3 = inlined_call_operand.hbm [shape: bf16[384,640], index: 3, kind: input, shape index: {}]
  %s4 = inlined_call_operand.vmem [shape: f32[1,640], index: 4, kind: input, shape index: {}]
  %s5 = inlined_call_operand.hbm [shape: f32[1,640], index: 5, kind: input, shape index: {}]
  %s6 = inlined_call_operand.<no memory space> [shape: f32[1,1], index: 6, kind: input, shape index: {}]
  %s7 = inlined_call_operand.vmem [shape: f32[16,1], index: 7, kind: output, shape index: {}]
  %s8 = sld [smem:[#allocation0]]
  $region58: #{tpu_custom_call.1} parent=0
    _
  %s10 = ssub.s32 1, %s8
  %s11 = scalar_select 0, %s10, %s8
  %12 = sst [smem:[#allocation2]] %s6
  $region1: #{tpu_custom_call.1} parent=0
    #allocation3 [shape = 'u8[8192]{0}', space=vmem, size = 0x2000, scoped, tag = 'input window, operand 0, single buffered']
    #allocation4 [shape = 's32[1]{0}', space=sflag, size = 0x4, scoped, tag = 'scoped memory for tpu_custom_call.1']
    #allocation5 [shape = 'u8[24576]{0}', space=vmem, size = 0x6000, scoped, tag = 'input window, operand 1, single buffered']
    #allocation6 [shape = 's32[1]{0}', space=sflag, size = 0x4, scoped, tag = 'scoped memory for tpu_custom_call.1']
    #allocation7 [shape = 'u8[1536]{0}', space=vmem, size = 0x800, scoped, tag = 'input window, operand 2, single buffered']
    #allocation8 [shape = 'u8[491520]{0}', space=vmem, size = 0x78000, scoped, tag = 'input window, operand 3, single buffered']
    #allocation9 [shape = 's32[1]{0}', space=sflag, size = 0x4, scoped, tag = 'scoped memory for tpu_custom_call.1']
    #allocation10 [shape = 'u8[2560]{0}', space=vmem, size = 0xc00, scoped, tag = 'input window, operand 5, single buffered']
    %13 = vsyncpa [#allocation4], 0
    %14 = vsyncpa [#allocation6], 0
    %15 = vsyncpa [#allocation9], 0
    // Predicated region
    $region2: #{tpu_custom_call.1} parent=1 // pred_check
      _
    $region3: #{tpu_custom_call.1} parent=1 // pred_check_branch
      %17 = sbr.rel (0) target = $region5
    $region4: #{tpu_custom_call.1} parent=1 // pred_region
      %19 = vsyncadd [#allocation4], 0
      %s20 = sshll.u32 %s0, 4
      %s21 = int_to_ptr.hbm [resolvable:$true] %s20
      %s22 = sshll.u32 [#allocation3], 4
      %s23 = int_to_ptr.vmem [resolvable:$true] %s22
      %28 = dma.hbm_to_vmem [thread:$0]  %s21, 256, %s23, [#allocation4], 128, 128, 8
    $region5: #{tpu_custom_call.1} parent=1 // pred_fallthru
      _
    // Predicated region
    $region6: #{tpu_custom_call.1} parent=1 // pred_check
      _
    $region7: #{tpu_custom_call.1} parent=1 // pred_check_branch
      %30 = sbr.rel (0) target = $region9
    $region8: #{tpu_custom_call.1} parent=1 // pred_region
      %32 = vsyncadd [#allocation6], 0
      %s33 = sshll.u32 %s1, 4
      %s34 = int_to_ptr.hbm [resolvable:$true] %s33
      %s35 = sshll.u32 [#allocation5], 4
      %s36 = int_to_ptr.vmem [resolvable:$true] %s35
      %41 = dma.hbm_to_vmem [thread:$0]  %s34, 768, %s36, [#allocation6], 192, 192, 12
    $region9: #{tpu_custom_call.1} parent=1 // pred_fallthru
      _
    // Predicated region
    $region10: #{tpu_custom_call.1} parent=1 // pred_check
      _
    $region11: #{tpu_custom_call.1} parent=1 // pred_check_branch
      %43 = sbr.rel (0) target = $region13
    $region12: #{tpu_custom_call.1} parent=1 // pred_region
      %45 = vsyncadd [#allocation6], 0
      %s47 = sshll.u32 %s2, 4
      %s48 = int_to_ptr.hbm [resolvable:$true] %s47
      %s49 = sshll.u32 [#allocation7], 4
      %s50 = int_to_ptr.vmem [resolvable:$true] %s49
      %52 = dma.hbm_to_vmem [thread:$0]  %s48, 48, %s50, [#allocation6]
    $region13: #{tpu_custom_call.1} parent=1 // pred_fallthru
      _
    // Predicated region
    $region14: #{tpu_custom_call.1} parent=1 // pred_check
      _
    $region15: #{tpu_custom_call.1} parent=1 // pred_check_branch
      %54 = sbr.rel (0) target = $region17
    $region16: #{tpu_custom_call.1} parent=1 // pred_region
      %56 = vsyncadd [#allocation9], 0
      %s57 = sshll.u32 %s3, 4
      %s58 = int_to_ptr.hbm [resolvable:$true] %s57
      %s59 = sshll.u32 [#allocation8], 4
      %s60 = int_to_ptr.vmem [resolvable:$true] %s59
      %65 = dma.hbm_to_vmem [thread:$0]  %s58, 15360, %s60, [#allocation9], 320, 320, 20
    $region17: #{tpu_custom_call.1} parent=1 // pred_fallthru
      _
    // Predicated region
    $region18: #{tpu_custom_call.1} parent=1 // pred_check
      _
    $region19: #{tpu_custom_call.1} parent=1 // pred_check_branch
      %67 = sbr.rel (0) target = $region21
    $region20: #{tpu_custom_call.1} parent=1 // pred_region
      _
    $region21: #{tpu_custom_call.1} parent=1 // pred_fallthru
      _
    // Predicated region
    $region22: #{tpu_custom_call.1} parent=1 // pred_check
      _
    $region23: #{tpu_custom_call.1} parent=1 // pred_check_branch
      %69 = sbr.rel (0) target = $region25
    $region24: #{tpu_custom_call.1} parent=1 // pred_region
      %71 = vsyncadd [#allocation9], 0
      %s73 = sshll.u32 %s5, 4
      %s74 = int_to_ptr.hbm [resolvable:$true] %s73
      %s75 = sshll.u32 [#allocation10], 4
      %s76 = int_to_ptr.vmem [resolvable:$true] %s75
      %78 = dma.hbm_to_vmem [thread:$0]  %s74, 80, %s76, [#allocation9]
    $region25: #{tpu_custom_call.1} parent=1 // pred_fallthru
      _
    // Predicated region
    $region26: #{tpu_custom_call.1} parent=1 // pred_check
      _
    $region27: #{tpu_custom_call.1} parent=1 // pred_check_branch
      %80 = sbr.rel (0) target = $region29
    $region28: #{tpu_custom_call.1} parent=1 // pred_region
      _
    $region29: #{tpu_custom_call.1} parent=1 // pred_fallthru
      _
    // Predicated region
    $region30: #{tpu_custom_call.1} parent=1 // pred_check
      _
    $region31: #{tpu_custom_call.1} parent=1 // pred_check_branch
      %82 = sbr.rel (0) target = $region33
    $region32: #{tpu_custom_call.1} parent=1 // pred_region
      %84 = dma.done [#allocation4], 256
    $region33: #{tpu_custom_call.1} parent=1 // pred_fallthru
      _
    // Predicated region
    $region34: #{tpu_custom_call.1} parent=1 // pred_check
      _
    $region35: #{tpu_custom_call.1} parent=1 // pred_check_branch
      %86 = sbr.rel (0) target = $region37
    $region36: #{tpu_custom_call.1} parent=1 // pred_region
      %88 = dma.done [#allocation6], 768
    $region37: #{tpu_custom_call.1} parent=1 // pred_fallthru
      _
    // Predicated region
    $region38: #{tpu_custom_call.1} parent=1 // pred_check
      _
    $region39: #{tpu_custom_call.1} parent=1 // pred_check_branch
      %90 = sbr.rel (0) target = $region41
    $region40: #{tpu_custom_call.1} parent=1 // pred_region
      %92 = dma.done [#allocation6], 48
    $region41: #{tpu_custom_call.1} parent=1 // pred_fallthru
      _
    // Predicated region
    $region42: #{tpu_custom_call.1} parent=1 // pred_check
      _
    $region43: #{tpu_custom_call.1} parent=1 // pred_check_branch
      %94 = sbr.rel (0) target = $region45
    $region44: #{tpu_custom_call.1} parent=1 // pred_region
      %96 = dma.done [#allocation9], 15360
    $region45: #{tpu_custom_call.1} parent=1 // pred_fallthru
      _
    // Predicated region
    $region46: #{tpu_custom_call.1} parent=1 // pred_check
      _
    $region47: #{tpu_custom_call.1} parent=1 // pred_check_branch
      %98 = sbr.rel (0) target = $region49
    $region48: #{tpu_custom_call.1} parent=1 // pred_region
      %100 = dma.done [#allocation9], 80
    $region49: #{tpu_custom_call.1} parent=1 // pred_fallthru
      _
    %v102 = vld [vmem:[#allocation3] sm:$0xff]
    %v103 = vld [vmem:[#allocation3 + $0x8] sm:$0xff]
    %v104 = vpack.c.bf16 %v103, %v102
    %v105 = vld [vmem:[#allocation5] sm:$0xff]
    %v106 = vld [vmem:[#allocation5 + $0x8] sm:$0xf]
    %v107 = vld [vmem:[#allocation5 + $0xc] sm:$0xff]
    %v108 = vld [vmem:[#allocation5 + $0x14] sm:$0xf]
    %v109 = vld [vmem:[#allocation5 + $0x18] sm:$0xff]
    %v110 = vld [vmem:[#allocation5 + $0x20] sm:$0xf]
    %v111 = vld [vmem:[#allocation5 + $0x24] sm:$0xff]
    %v112 = vld [vmem:[#allocation5 + $0x2c] sm:$0xf]
    %v121 = vunpack.c.l.b16 %v105
    %v122 = vunpack.c.h.b16 %v105
    %v123 = vunpack.c.l.b16 %v106
    %v124 = vunpack.c.l.b16 %v107
    %v125 = vunpack.c.h.b16 %v107
    %v126 = vunpack.c.l.b16 %v108
    %v127 = vunpack.c.l.b16 %v109
    %v128 = vunpack.c.h.b16 %v109
    %v129 = vunpack.c.l.b16 %v110
    %v130 = vunpack.c.l.b16 %v111
    %v131 = vunpack.c.h.b16 %v111
    %v132 = vunpack.c.l.b16 %v112
    %v133 = vpack.c.b16 %v124, %v121
    %v134 = vpack.c.b16 %v125, %v122
    %v135 = vpack.c.b16 %v126, %v123
    %v136 = vpack.c.b16 %v130, %v127
    %v137 = vpack.c.b16 %v131, %v128
    %v138 = vpack.c.b16 %v132, %v129
    %vm145 = vcmask 261120
    %v147 = vsel %vm145, %v104, 0
    %149 = vmatpush.bf16.msra.mxu0 0
    %150 = vmatpush.bf16.msra.mxu0 0
    %151 = vmatpush.bf16.msra.mxu0 0
    %152 = vmatpush.bf16.msra.mxu0 0
    %153 = vmatpush.bf16.msra.mxu0 0
    %154 = vmatpush.bf16.msra.mxu0 0
    %155 = vmatpush.bf16.msra.mxu0 %v136
    %156 = vmatpush.bf16.msra.mxu0 %v133
    %157 = vmatmul.bf16.gmra.mxu0 %v147
    %v158 = vpop.f32.mrf.mxu0
    %v159 = vadd.f32 0.0, %v158
    %v160 = vpop.f32.mrf.mxu0
    %v161 = vadd.f32 0.0, %v160
    %162 = vdwg.mxu0
    %163 = vmatpush.bf16.msra.mxu0 0
    %164 = vmatpush.bf16.msra.mxu0 0
    %165 = vmatpush.bf16.msra.mxu0 0
    %166 = vmatpush.bf16.msra.mxu0 0
    %167 = vmatpush.bf16.msra.mxu0 0
    %168 = vmatpush.bf16.msra.mxu0 0
    %169 = vmatpush.bf16.msra.mxu0 %v137
    %170 = vmatpush.bf16.msra.mxu0 %v134
    %171 = vmatmul.bf16.gmra.mxu0 %v147
    %v172 = vpop.f32.mrf.mxu0
    %v173 = vadd.f32 0.0, %v172
    %v174 = vpop.f32.mrf.mxu0
    %v175 = vadd.f32 0.0, %v174
    %176 = vdwg.mxu0
    %177 = vmatpush.bf16.msra.mxu0 0
    %178 = vmatpush.bf16.msra.mxu0 0
    %179 = vmatpush.bf16.msra.mxu0 0
    %180 = vmatpush.bf16.msra.mxu0 0
    %181 = vmatpush.bf16.msra.mxu0 0
    %182 = vmatpush.bf16.msra.mxu0 0
    %183 = vmatpush.bf16.msra.mxu0 %v138
    %184 = vmatpush.bf16.msra.mxu0 %v135
    %185 = vmatmul.bf16.gmra.mxu0 %v147
    %v186 = vpop.f32.mrf.mxu0
    %v187 = vadd.f32 0.0, %v186
    %v188 = vpop.f32.mrf.mxu0
    %v189 = vadd.f32 0.0, %v188
    %190 = vdwg.mxu0
    %v191 = vpack.c.bf16 %v173, %v159
    %v192 = vpack.c.bf16 %v187, %v187
    %v193 = vpack.c.bf16 %v175, %v161
    %v194 = vpack.c.bf16 %v189, %v189
    %v195 = vld [vmem:[#allocation7] sm:$0x7]
    %v197 = vperm.slane %v195, 0
    %v198 = vperm.slane %v195, 1
    %v199 = vperm.slane %v195, 2
    %v203 = vpack.c.bf16 %v198, %v197
    %v204 = vpack.c.bf16 %v199, %v199
    %v207 = vunpack.c.l.b16 %v203
    %v208 = vunpack.c.h.b16 %v203
    %v209 = vunpack.c.l.b16 %v204
    %v210 = vpack.c.b16 %v207, %v207
    %v211 = vpack.c.b16 %v208, %v208
    %v212 = vpack.c.b16 %v209, %v209
    %v214 = vpack.i.b16 %v210, %v210
    %v216 = vperm.slane %v214, 0
    %v218 = vpack.i.b16 %v211, %v211
    %v220 = vperm.slane %v218, 0
    %v222 = vpack.i.b16 %v212, %v212
    %v224 = vperm.slane %v222, 0
    %v225 = vunpack.c.l.bf16 %v191
    %v226 = vunpack.c.h.bf16 %v191
    %v227 = vunpack.c.l.bf16 %v192
    %v228 = vunpack.c.l.bf16 %v193
    %v229 = vunpack.c.h.bf16 %v193
    %v230 = vunpack.c.l.bf16 %v194
    %v231 = vunpack.c.l.bf16 %v216
    %v232 = vunpack.c.l.bf16 %v220
    %v233 = vunpack.c.l.bf16 %v224
    %v234 = vadd.f32 %v225, %v231
    %v235 = vadd.f32 %v226, %v232
    %v236 = vadd.f32 %v227, %v233
    %v237 = vadd.f32 %v228, %v231
    %v238 = vadd.f32 %v229, %v232
    %v239 = vadd.f32 %v230, %v233
    %v240 = vpack.c.bf16 %v235, %v234
    %v241 = vpack.c.bf16 %v236, %v236
    %v242 = vpack.c.bf16 %v238, %v237
    %v243 = vpack.c.bf16 %v239, %v239
    %v244 = vunpack.c.l.bf16 %v240
    %v245 = vunpack.c.h.bf16 %v240
    %v246 = vunpack.c.l.bf16 %v241
    %v247 = vunpack.c.l.bf16 %v242
    %v248 = vunpack.c.h.bf16 %v242
    %v249 = vunpack.c.l.bf16 %v243
    %v250 = vmax.f32 %v244, 0.0
    %v251 = vmax.f32 %v245, 0.0
    %v252 = vmax.f32 %v246, 0.0
    %v253 = vmax.f32 %v247, 0.0
    %v254 = vmax.f32 %v248, 0.0
    %v255 = vmax.f32 %v249, 0.0
    %v256 = vpack.c.bf16 %v253, %v250
    %v257 = vpack.c.bf16 %v254, %v251
    %v258 = vpack.c.bf16 %v255, %v252
    %v259 = vld [vmem:[#allocation8] sm:$0xff]
    %v260 = vld [vmem:[#allocation8 + $0x8] sm:$0xff]
    %v261 = vld [vmem:[#allocation8 + $0x10] sm:$0xf]
    %v262 = vld [vmem:[#allocation8 + $0x14] sm:$0xff]
    %v263 = vld [vmem:[#allocation8 + $0x1c] sm:$0xff]
    %v264 = vld [vmem:[#allocation8 + $0x24] sm:$0xf]
    %v265 = vld [vmem:[#allocation8 + $0x28] sm:$0xff]
    %v266 = vld [vmem:[#allocation8 + $0x30] sm:$0xff]
    %v267 = vld [vmem:[#allocation8 + $0x38] sm:$0xf]
    %v268 = vld [vmem:[#allocation8 + $0x3c] sm:$0xff]
    %v269 = vld [vmem:[#allocation8 + $0x44] sm:$0xff]
    %v270 = vld [vmem:[#allocation8 + $0x4c] sm:$0xf]
    %v271 = vld [vmem:[#allocation8 + $0x50] sm:$0xff]
    %v272 = vld [vmem:[#allocation8 + $0x58] sm:$0xff]
    %v273 = vld [vmem:[#allocation8 + $0x60] sm:$0xf]
    %v274 = vld [vmem:[#allocation8 + $0x64] sm:$0xff]
    %v275 = vld [vmem:[#allocation8 + $0x6c] sm:$0xff]
    %v276 = vld [vmem:[#allocation8 + $0x74] sm:$0xf]
    %v277 = vld [vmem:[#allocation8 + $0x78] sm:$0xff]
    %v278 = vld [vmem:[#allocation8 + $0x80] sm:$0xff]
    %v279 = vld [vmem:[#allocation8 + $0x88] sm:$0xf]
    %v280 = vld [vmem:[#allocation8 + $0x8c] sm:$0xff]
    %v281 = vld [vmem:[#allocation8 + $0x94] sm:$0xff]
    %v282 = vld [vmem:[#allocation8 + $0x9c] sm:$0xf]
    %v283 = vld [vmem:[#allocation8 + $0xa0] sm:$0xff]
    %v284 = vld [vmem:[#allocation8 + $0xa8] sm:$0xff]
    %v285 = vld [vmem:[#allocation8 + $0xb0] sm:$0xf]
    %v286 = vld [vmem:[#allocation8 + $0xb4] sm:$0xff]
    %v287 = vld [vmem:[#allocation8 + $0xbc] sm:$0xff]
    %v288 = vld [vmem:[#allocation8 + $0xc4] sm:$0xf]
    %v289 = vld [vmem:[#allocation8 + $0xc8] sm:$0xff]
    %v290 = vld [vmem:[#allocation8 + $0xd0] sm:$0xff]
    %v291 = vld [vmem:[#allocation8 + $0xd8] sm:$0xf]
    %v292 = vld [vmem:[#allocation8 + $0xdc] sm:$0xff]
    %v293 = vld [vmem:[#allocation8 + $0xe4] sm:$0xff]
    %v294 = vld [vmem:[#allocation8 + $0xec] sm:$0xf]
    %v295 = vld [vmem:[#allocation8 + $0xf0] sm:$0xff]
    %v296 = vld [vmem:[#allocation8 + $0xf8] sm:$0xff]
    %v297 = vld [vmem:[#allocation8 + $0x100] sm:$0xf]
    %v298 = vld [vmem:[#allocation8 + $0x104] sm:$0xff]
    %v299 = vld [vmem:[#allocation8 + $0x10c] sm:$0xff]
    %v300 = vld [vmem:[#allocation8 + $0x114] sm:$0xf]
    %v301 = vld [vmem:[#allocation8 + $0x118] sm:$0xff]
    %v302 = vld [vmem:[#allocation8 + $0x120] sm:$0xff]
    %v303 = vld [vmem:[#allocation8 + $0x128] sm:$0xf]
    %v304 = vld [vmem:[#allocation8 + $0x12c] sm:$0xff]
    %v305 = vld [vmem:[#allocation8 + $0x134] sm:$0xff]
    %v306 = vld [vmem:[#allocation8 + $0x13c] sm:$0xf]
    %v307 = vld [vmem:[#allocation8 + $0x140] sm:$0xff]
    %v308 = vld [vmem:[#allocation8 + $0x148] sm:$0xff]
    %v309 = vld [vmem:[#allocation8 + $0x150] sm:$0xf]
    %v310 = vld [vmem:[#allocation8 + $0x154] sm:$0xff]
    %v311 = vld [vmem:[#allocation8 + $0x15c] sm:$0xff]
    %v312 = vld [vmem:[#allocation8 + $0x164] sm:$0xf]
    %v313 = vld [vmem:[#allocation8 + $0x168] sm:$0xff]
    %v314 = vld [vmem:[#allocation8 + $0x170] sm:$0xff]
    %v315 = vld [vmem:[#allocation8 + $0x178] sm:$0xf]
    %v316 = vld [vmem:[#allocation8 + $0x17c] sm:$0xff]
    %v317 = vld [vmem:[#allocation8 + $0x184] sm:$0xff]
    %v318 = vld [vmem:[#allocation8 + $0x18c] sm:$0xf]
    %v319 = vld [vmem:[#allocation8 + $0x190] sm:$0xff]
    %v320 = vld [vmem:[#allocation8 + $0x198] sm:$0xff]
    %v321 = vld [vmem:[#allocation8 + $0x1a0] sm:$0xf]
    %v322 = vld [vmem:[#allocation8 + $0x1a4] sm:$0xff]
    %v323 = vld [vmem:[#allocation8 + $0x1ac] sm:$0xff]
    %v324 = vld [vmem:[#allocation8 + $0x1b4] sm:$0xf]
    %v325 = vld [vmem:[#allocation8 + $0x1b8] sm:$0xff]
    %v326 = vld [vmem:[#allocation8 + $0x1c0] sm:$0xff]
    %v327 = vld [vmem:[#allocation8 + $0x1c8] sm:$0xf]
    %v328 = vld [vmem:[#allocation8 + $0x1cc] sm:$0xff]
    %v329 = vld [vmem:[#allocation8 + $0x1d4] sm:$0xff]
    %v330 = vld [vmem:[#allocation8 + $0x1dc] sm:$0xf]
    %v331 = vld [vmem:[#allocation8 + $0x1e0] sm:$0xff]
    %v332 = vld [vmem:[#allocation8 + $0x1e8] sm:$0xff]
    %v333 = vld [vmem:[#allocation8 + $0x1f0] sm:$0xf]
    %v334 = vld [vmem:[#allocation8 + $0x1f4] sm:$0xff]
    %v335 = vld [vmem:[#allocation8 + $0x1fc] sm:$0xff]
    %v336 = vld [vmem:[#allocation8 + $0x204] sm:$0xf]
    %v337 = vld [vmem:[#allocation8 + $0x208] sm:$0xff]
    %v338 = vld [vmem:[#allocation8 + $0x210] sm:$0xff]
    %v339 = vld [vmem:[#allocation8 + $0x218] sm:$0xf]
    %v340 = vld [vmem:[#allocation8 + $0x21c] sm:$0xff]
    %v341 = vld [vmem:[#allocation8 + $0x224] sm:$0xff]
    %v342 = vld [vmem:[#allocation8 + $0x22c] sm:$0xf]
    %v343 = vld [vmem:[#allocation8 + $0x230] sm:$0xff]
    %v344 = vld [vmem:[#allocation8 + $0x238] sm:$0xff]
    %v345 = vld [vmem:[#allocation8 + $0x240] sm:$0xf]
    %v346 = vld [vmem:[#allocation8 + $0x244] sm:$0xff]
    %v347 = vld [vmem:[#allocation8 + $0x24c] sm:$0xff]
    %v348 = vld [vmem:[#allocation8 + $0x254] sm:$0xf]
    %v349 = vld [vmem:[#allocation8 + $0x258] sm:$0xff]
    %v350 = vld [vmem:[#allocation8 + $0x260] sm:$0xff]
    %v351 = vld [vmem:[#allocation8 + $0x268] sm:$0xf]
    %v352 = vld [vmem:[#allocation8 + $0x26c] sm:$0xff]
    %v353 = vld [vmem:[#allocation8 + $0x274] sm:$0xff]
    %v354 = vld [vmem:[#allocation8 + $0x27c] sm:$0xf]
    %v355 = vld [vmem:[#allocation8 + $0x280] sm:$0xff]
    %v356 = vld [vmem:[#allocation8 + $0x288] sm:$0xff]
    %v357 = vld [vmem:[#allocation8 + $0x290] sm:$0xf]
    %v358 = vld [vmem:[#allocation8 + $0x294] sm:$0xff]
    %v359 = vld [vmem:[#allocation8 + $0x29c] sm:$0xff]
    %v360 = vld [vmem:[#allocation8 + $0x2a4] sm:$0xf]
    %v361 = vld [vmem:[#allocation8 + $0x2a8] sm:$0xff]
    %v362 = vld [vmem:[#allocation8 + $0x2b0] sm:$0xff]
    %v363 = vld [vmem:[#allocation8 + $0x2b8] sm:$0xf]
    %v364 = vld [vmem:[#allocation8 + $0x2bc] sm:$0xff]
    %v365 = vld [vmem:[#allocation8 + $0x2c4] sm:$0xff]
    %v366 = vld [vmem:[#allocation8 + $0x2cc] sm:$0xf]
    %v367 = vld [vmem:[#allocation8 + $0x2d0] sm:$0xff]
    %v368 = vld [vmem:[#allocation8 + $0x2d8] sm:$0xff]
    %v369 = vld [vmem:[#allocation8 + $0x2e0] sm:$0xf]
    %v370 = vld [vmem:[#allocation8 + $0x2e4] sm:$0xff]
    %v371 = vld [vmem:[#allocation8 + $0x2ec] sm:$0xff]
    %v372 = vld [vmem:[#allocation8 + $0x2f4] sm:$0xf]
    %v373 = vld [vmem:[#allocation8 + $0x2f8] sm:$0xff]
    %v374 = vld [vmem:[#allocation8 + $0x300] sm:$0xff]
    %v375 = vld [vmem:[#allocation8 + $0x308] sm:$0xf]
    %v376 = vld [vmem:[#allocation8 + $0x30c] sm:$0xff]
    %v377 = vld [vmem:[#allocation8 + $0x314] sm:$0xff]
    %v378 = vld [vmem:[#allocation8 + $0x31c] sm:$0xf]
    %v379 = vld [vmem:[#allocation8 + $0x320] sm:$0xff]
    %v380 = vld [vmem:[#allocation8 + $0x328] sm:$0xff]
    %v381 = vld [vmem:[#allocation8 + $0x330] sm:$0xf]
    %v382 = vld [vmem:[#allocation8 + $0x334] sm:$0xff]
    %v383 = vld [vmem:[#allocation8 + $0x33c] sm:$0xff]
    %v384 = vld [vmem:[#allocation8 + $0x344] sm:$0xf]
    %v385 = vld [vmem:[#allocation8 + $0x348] sm:$0xff]
    %v386 = vld [vmem:[#allocation8 + $0x350] sm:$0xff]
    %v387 = vld [vmem:[#allocation8 + $0x358] sm:$0xf]
    %v388 = vld [vmem:[#allocation8 + $0x35c] sm:$0xff]
    %v389 = vld [vmem:[#allocation8 + $0x364] sm:$0xff]
    %v390 = vld [vmem:[#allocation8 + $0x36c] sm:$0xf]
    %v391 = vld [vmem:[#allocation8 + $0x370] sm:$0xff]
    %v392 = vld [vmem:[#allocation8 + $0x378] sm:$0xff]
    %v393 = vld [vmem:[#allocation8 + $0x380] sm:$0xf]
    %v394 = vld [vmem:[#allocation8 + $0x384] sm:$0xff]
    %v395 = vld [vmem:[#allocation8 + $0x38c] sm:$0xff]
    %v396 = vld [vmem:[#allocation8 + $0x394] sm:$0xf]
    %v397 = vld [vmem:[#allocation8 + $0x398] sm:$0xff]
    %v398 = vld [vmem:[#allocation8 + $0x3a0] sm:$0xff]
    %v399 = vld [vmem:[#allocation8 + $0x3a8] sm:$0xf]
    %v400 = vld [vmem:[#allocation8 + $0x3ac] sm:$0xff]
    %v401 = vld [vmem:[#allocation8 + $0x3b4] sm:$0xff]
    %v402 = vld [vmem:[#allocation8 + $0x3bc] sm:$0xf]
    %v547 = vunpack.c.l.b16 %v259
    %v548 = vunpack.c.h.b16 %v259
    %v549 = vunpack.c.l.b16 %v260
    %v550 = vunpack.c.h.b16 %v260
    %v551 = vunpack.c.l.b16 %v261
    %v552 = vunpack.c.l.b16 %v262
    %v553 = vunpack.c.h.b16 %v262
    %v554 = vunpack.c.l.b16 %v263
    %v555 = vunpack.c.h.b16 %v263
    %v556 = vunpack.c.l.b16 %v264
    %v557 = vunpack.c.l.b16 %v265
    %v558 = vunpack.c.h.b16 %v265
    %v559 = vunpack.c.l.b16 %v266
    %v560 = vunpack.c.h.b16 %v266
    %v561 = vunpack.c.l.b16 %v267
    %v562 = vunpack.c.l.b16 %v268
    %v563 = vunpack.c.h.b16 %v268
    %v564 = vunpack.c.l.b16 %v269
    %v565 = vunpack.c.h.b16 %v269
    %v566 = vunpack.c.l.b16 %v270
    %v567 = vunpack.c.l.b16 %v271
    %v568 = vunpack.c.h.b16 %v271
    %v569 = vunpack.c.l.b16 %v272
    %v570 = vunpack.c.h.b16 %v272
    %v571 = vunpack.c.l.b16 %v273
    %v572 = vunpack.c.l.b16 %v274
    %v573 = vunpack.c.h.b16 %v274
    %v574 = vunpack.c.l.b16 %v275
    %v575 = vunpack.c.h.b16 %v275
    %v576 = vunpack.c.l.b16 %v276
    %v577 = vunpack.c.l.b16 %v277
    %v578 = vunpack.c.h.b16 %v277
    %v579 = vunpack.c.l.b16 %v278
    %v580 = vunpack.c.h.b16 %v278
    %v581 = vunpack.c.l.b16 %v279
    %v582 = vunpack.c.l.b16 %v280
    %v583 = vunpack.c.h.b16 %v280
    %v584 = vunpack.c.l.b16 %v281
    %v585 = vunpack.c.h.b16 %v281
    %v586 = vunpack.c.l.b16 %v282
    %v587 = vunpack.c.l.b16 %v283
    %v588 = vunpack.c.h.b16 %v283
    %v589 = vunpack.c.l.b16 %v284
    %v590 = vunpack.c.h.b16 %v284
    %v591 = vunpack.c.l.b16 %v285
    %v592 = vunpack.c.l.b16 %v286
    %v593 = vunpack.c.h.b16 %v286
    %v594 = vunpack.c.l.b16 %v287
    %v595 = vunpack.c.h.b16 %v287
    %v596 = vunpack.c.l.b16 %v288
    %v597 = vunpack.c.l.b16 %v289
    %v598 = vunpack.c.h.b16 %v289
    %v599 = vunpack.c.l.b16 %v290
    %v600 = vunpack.c.h.b16 %v290
    %v601 = vunpack.c.l.b16 %v291
    %v602 = vunpack.c.l.b16 %v292
    %v603 = vunpack.c.h.b16 %v292
    %v604 = vunpack.c.l.b16 %v293
    %v605 = vunpack.c.h.b16 %v293
    %v606 = vunpack.c.l.b16 %v294
    %v607 = vunpack.c.l.b16 %v295
    %v608 = vunpack.c.h.b16 %v295
    %v609 = vunpack.c.l.b16 %v296
    %v610 = vunpack.c.h.b16 %v296
    %v611 = vunpack.c.l.b16 %v297
    %v612 = vunpack.c.l.b16 %v298
    %v613 = vunpack.c.h.b16 %v298
    %v614 = vunpack.c.l.b16 %v299
    %v615 = vunpack.c.h.b16 %v299
    %v616 = vunpack.c.l.b16 %v300
    %v617 = vunpack.c.l.b16 %v301
    %v618 = vunpack.c.h.b16 %v301
    %v619 = vunpack.c.l.b16 %v302
    %v620 = vunpack.c.h.b16 %v302
    %v621 = vunpack.c.l.b16 %v303
    %v622 = vunpack.c.l.b16 %v304
    %v623 = vunpack.c.h.b16 %v304
    %v624 = vunpack.c.l.b16 %v305
    %v625 = vunpack.c.h.b16 %v305
    %v626 = vunpack.c.l.b16 %v306
    %v627 = vunpack.c.l.b16 %v307
    %v628 = vunpack.c.h.b16 %v307
    %v629 = vunpack.c.l.b16 %v308
    %v630 = vunpack.c.h.b16 %v308
    %v631 = vunpack.c.l.b16 %v309
    %v632 = vunpack.c.l.b16 %v310
    %v633 = vunpack.c.h.b16 %v310
    %v634 = vunpack.c.l.b16 %v311
    %v635 = vunpack.c.h.b16 %v311
    %v636 = vunpack.c.l.b16 %v312
    %v637 = vunpack.c.l.b16 %v313
    %v638 = vunpack.c.h.b16 %v313
    %v639 = vunpack.c.l.b16 %v314
    %v640 = vunpack.c.h.b16 %v314
    %v641 = vunpack.c.l.b16 %v315
    %v642 = vunpack.c.l.b16 %v316
    %v643 = vunpack.c.h.b16 %v316
    %v644 = vunpack.c.l.b16 %v317
    %v645 = vunpack.c.h.b16 %v317
    %v646 = vunpack.c.l.b16 %v318
    %v647 = vunpack.c.l.b16 %v319
    %v648 = vunpack.c.h.b16 %v319
    %v649 = vunpack.c.l.b16 %v320
    %v650 = vunpack.c.h.b16 %v320
    %v651 = vunpack.c.l.b16 %v321
    %v652 = vunpack.c.l.b16 %v322
    %v653 = vunpack.c.h.b16 %v322
    %v654 = vunpack.c.l.b16 %v323
    %v655 = vunpack.c.h.b16 %v323
    %v656 = vunpack.c.l.b16 %v324
    %v657 = vunpack.c.l.b16 %v325
    %v658 = vunpack.c.h.b16 %v325
    %v659 = vunpack.c.l.b16 %v326
    %v660 = vunpack.c.h.b16 %v326
    %v661 = vunpack.c.l.b16 %v327
    %v662 = vunpack.c.l.b16 %v328
    %v663 = vunpack.c.h.b16 %v328
    %v664 = vunpack.c.l.b16 %v329
    %v665 = vunpack.c.h.b16 %v329
    %v666 = vunpack.c.l.b16 %v330
    %v667 = vunpack.c.l.b16 %v331
    %v668 = vunpack.c.h.b16 %v331
    %v669 = vunpack.c.l.b16 %v332
    %v670 = vunpack.c.h.b16 %v332
    %v671 = vunpack.c.l.b16 %v333
    %v672 = vunpack.c.l.b16 %v334
    %v673 = vunpack.c.h.b16 %v334
    %v674 = vunpack.c.l.b16 %v335
    %v675 = vunpack.c.h.b16 %v335
    %v676 = vunpack.c.l.b16 %v336
    %v677 = vunpack.c.l.b16 %v337
    %v678 = vunpack.c.h.b16 %v337
    %v679 = vunpack.c.l.b16 %v338
    %v680 = vunpack.c.h.b16 %v338
    %v681 = vunpack.c.l.b16 %v339
    %v682 = vunpack.c.l.b16 %v340
    %v683 = vunpack.c.h.b16 %v340
    %v684 = vunpack.c.l.b16 %v341
    %v685 = vunpack.c.h.b16 %v341
    %v686 = vunpack.c.l.b16 %v342
    %v687 = vunpack.c.l.b16 %v343
    %v688 = vunpack.c.h.b16 %v343
    %v689 = vunpack.c.l.b16 %v344
    %v690 = vunpack.c.h.b16 %v344
    %v691 = vunpack.c.l.b16 %v345
    %v692 = vunpack.c.l.b16 %v346
    %v693 = vunpack.c.h.b16 %v346
    %v694 = vunpack.c.l.b16 %v347
    %v695 = vunpack.c.h.b16 %v347
    %v696 = vunpack.c.l.b16 %v348
    %v697 = vunpack.c.l.b16 %v349
    %v698 = vunpack.c.h.b16 %v349
    %v699 = vunpack.c.l.b16 %v350
    %v700 = vunpack.c.h.b16 %v350
    %v701 = vunpack.c.l.b16 %v351
    %v702 = vunpack.c.l.b16 %v352
    %v703 = vunpack.c.h.b16 %v352
    %v704 = vunpack.c.l.b16 %v353
    %v705 = vunpack.c.h.b16 %v353
    %v706 = vunpack.c.l.b16 %v354
    %v707 = vunpack.c.l.b16 %v355
    %v708 = vunpack.c.h.b16 %v355
    %v709 = vunpack.c.l.b16 %v356
    %v710 = vunpack.c.h.b16 %v356
    %v711 = vunpack.c.l.b16 %v357
    %v712 = vunpack.c.l.b16 %v358
    %v713 = vunpack.c.h.b16 %v358
    %v714 = vunpack.c.l.b16 %v359
    %v715 = vunpack.c.h.b16 %v359
    %v716 = vunpack.c.l.b16 %v360
    %v717 = vunpack.c.l.b16 %v361
    %v718 = vunpack.c.h.b16 %v361
    %v719 = vunpack.c.l.b16 %v362
    %v720 = vunpack.c.h.b16 %v362
    %v721 = vunpack.c.l.b16 %v363
    %v722 = vunpack.c.l.b16 %v364
    %v723 = vunpack.c.h.b16 %v364
    %v724 = vunpack.c.l.b16 %v365
    %v725 = vunpack.c.h.b16 %v365
    %v726 = vunpack.c.l.b16 %v366
    %v727 = vunpack.c.l.b16 %v367
    %v728 = vunpack.c.h.b16 %v367
    %v729 = vunpack.c.l.b16 %v368
    %v730 = vunpack.c.h.b16 %v368
    %v731 = vunpack.c.l.b16 %v369
    %v732 = vunpack.c.l.b16 %v370
    %v733 = vunpack.c.h.b16 %v370
    %v734 = vunpack.c.l.b16 %v371
    %v735 = vunpack.c.h.b16 %v371
    %v736 = vunpack.c.l.b16 %v372
    %v737 = vunpack.c.l.b16 %v373
    %v738 = vunpack.c.h.b16 %v373
    %v739 = vunpack.c.l.b16 %v374
    %v740 = vunpack.c.h.b16 %v374
    %v741 = vunpack.c.l.b16 %v375
    %v742 = vunpack.c.l.b16 %v376
    %v743 = vunpack.c.h.b16 %v376
    %v744 = vunpack.c.l.b16 %v377
    %v745 = vunpack.c.h.b16 %v377
    %v746 = vunpack.c.l.b16 %v378
    %v747 = vunpack.c.l.b16 %v379
    %v748 = vunpack.c.h.b16 %v379
    %v749 = vunpack.c.l.b16 %v380
    %v750 = vunpack.c.h.b16 %v380
    %v751 = vunpack.c.l.b16 %v381
    %v752 = vunpack.c.l.b16 %v382
    %v753 = vunpack.c.h.b16 %v382
    %v754 = vunpack.c.l.b16 %v383
    %v755 = vunpack.c.h.b16 %v383
    %v756 = vunpack.c.l.b16 %v384
    %v757 = vunpack.c.l.b16 %v385
    %v758 = vunpack.c.h.b16 %v385
    %v759 = vunpack.c.l.b16 %v386
    %v760 = vunpack.c.h.b16 %v386
    %v761 = vunpack.c.l.b16 %v387
    %v762 = vunpack.c.l.b16 %v388
    %v763 = vunpack.c.h.b16 %v388
    %v764 = vunpack.c.l.b16 %v389
    %v765 = vunpack.c.h.b16 %v389
    %v766 = vunpack.c.l.b16 %v390
    %v767 = vunpack.c.l.b16 %v391
    %v768 = vunpack.c.h.b16 %v391
    %v769 = vunpack.c.l.b16 %v392
    %v770 = vunpack.c.h.b16 %v392
    %v771 = vunpack.c.l.b16 %v393
    %v772 = vunpack.c.l.b16 %v394
    %v773 = vunpack.c.h.b16 %v394
    %v774 = vunpack.c.l.b16 %v395
    %v775 = vunpack.c.h.b16 %v395
    %v776 = vunpack.c.l.b16 %v396
    %v777 = vunpack.c.l.b16 %v397
    %v778 = vunpack.c.h.b16 %v397
    %v779 = vunpack.c.l.b16 %v398
    %v780 = vunpack.c.h.b16 %v398
    %v781 = vunpack.c.l.b16 %v399
    %v782 = vunpack.c.l.b16 %v400
    %v783 = vunpack.c.h.b16 %v400
    %v784 = vunpack.c.l.b16 %v401
    %v785 = vunpack.c.h.b16 %v401
    %v786 = vunpack.c.l.b16 %v402
    %v787 = vpack.c.b16 %v552, %v547
    %v788 = vpack.c.b16 %v553, %v548
    %v789 = vpack.c.b16 %v554, %v549
    %v790 = vpack.c.b16 %v555, %v550
    %v791 = vpack.c.b16 %v556, %v551
    %v792 = vpack.c.b16 %v562, %v557
    %v793 = vpack.c.b16 %v563, %v558
    %v794 = vpack.c.b16 %v564, %v559
    %v795 = vpack.c.b16 %v565, %v560
    %v796 = vpack.c.b16 %v566, %v561
    %v797 = vpack.c.b16 %v572, %v567
    %v798 = vpack.c.b16 %v573, %v568
    %v799 = vpack.c.b16 %v574, %v569
    %v800 = vpack.c.b16 %v575, %v570
    %v801 = vpack.c.b16 %v576, %v571
    %v802 = vpack.c.b16 %v582, %v577
    %v803 = vpack.c.b16 %v583, %v578
    %v804 = vpack.c.b16 %v584, %v579
    %v805 = vpack.c.b16 %v585, %v580
    %v806 = vpack.c.b16 %v586, %v581
    %v807 = vpack.c.b16 %v592, %v587
    %v808 = vpack.c.b16 %v593, %v588
    %v809 = vpack.c.b16 %v594, %v589
    %v810 = vpack.c.b16 %v595, %v590
    %v811 = vpack.c.b16 %v596, %v591
    %v812 = vpack.c.b16 %v602, %v597
    %v813 = vpack.c.b16 %v603, %v598
    %v814 = vpack.c.b16 %v604, %v599
    %v815 = vpack.c.b16 %v605, %v600
    %v816 = vpack.c.b16 %v606, %v601
    %v817 = vpack.c.b16 %v612, %v607
    %v818 = vpack.c.b16 %v613, %v608
    %v819 = vpack.c.b16 %v614, %v609
    %v820 = vpack.c.b16 %v615, %v610
    %v821 = vpack.c.b16 %v616, %v611
    %v822 = vpack.c.b16 %v622, %v617
    %v823 = vpack.c.b16 %v623, %v618
    %v824 = vpack.c.b16 %v624, %v619
    %v825 = vpack.c.b16 %v625, %v620
    %v826 = vpack.c.b16 %v626, %v621
    %v827 = vpack.c.b16 %v632, %v627
    %v828 = vpack.c.b16 %v633, %v628
    %v829 = vpack.c.b16 %v634, %v629
    %v830 = vpack.c.b16 %v635, %v630
    %v831 = vpack.c.b16 %v636, %v631
    %v832 = vpack.c.b16 %v642, %v637
    %v833 = vpack.c.b16 %v643, %v638
    %v834 = vpack.c.b16 %v644, %v639
    %v835 = vpack.c.b16 %v645, %v640
    %v836 = vpack.c.b16 %v646, %v641
    %v837 = vpack.c.b16 %v652, %v647
    %v838 = vpack.c.b16 %v653, %v648
    %v839 = vpack.c.b16 %v654, %v649
    %v840 = vpack.c.b16 %v655, %v650
    %v841 = vpack.c.b16 %v656, %v651
    %v842 = vpack.c.b16 %v662, %v657
    %v843 = vpack.c.b16 %v663, %v658
    %v844 = vpack.c.b16 %v664, %v659
    %v845 = vpack.c.b16 %v665, %v660
    %v846 = vpack.c.b16 %v666, %v661
    %v847 = vpack.c.b16 %v672, %v667
    %v848 = vpack.c.b16 %v673, %v668
    %v849 = vpack.c.b16 %v674, %v669
    %v850 = vpack.c.b16 %v675, %v670
    %v851 = vpack.c.b16 %v676, %v671
    %v852 = vpack.c.b16 %v682, %v677
    %v853 = vpack.c.b16 %v683, %v678
    %v854 = vpack.c.b16 %v684, %v679
    %v855 = vpack.c.b16 %v685, %v680
    %v856 = vpack.c.b16 %v686, %v681
    %v857 = vpack.c.b16 %v692, %v687
    %v858 = vpack.c.b16 %v693, %v688
    %v859 = vpack.c.b16 %v694, %v689
    %v860 = vpack.c.b16 %v695, %v690
    %v861 = vpack.c.b16 %v696, %v691
    %v862 = vpack.c.b16 %v702, %v697
    %v863 = vpack.c.b16 %v703, %v698
    %v864 = vpack.c.b16 %v704, %v699
    %v865 = vpack.c.b16 %v705, %v700
    %v866 = vpack.c.b16 %v706, %v701
    %v867 = vpack.c.b16 %v712, %v707
    %v868 = vpack.c.b16 %v713, %v708
    %v869 = vpack.c.b16 %v714, %v709
    %v870 = vpack.c.b16 %v715, %v710
    %v871 = vpack.c.b16 %v716, %v711
    %v872 = vpack.c.b16 %v722, %v717
    %v873 = vpack.c.b16 %v723, %v718
    %v874 = vpack.c.b16 %v724, %v719
    %v875 = vpack.c.b16 %v725, %v720
    %v876 = vpack.c.b16 %v726, %v721
    %v877 = vpack.c.b16 %v732, %v727
    %v878 = vpack.c.b16 %v733, %v728
    %v879 = vpack.c.b16 %v734, %v729
    %v880 = vpack.c.b16 %v735, %v730
    %v881 = vpack.c.b16 %v736, %v731
    %v882 = vpack.c.b16 %v742, %v737
    %v883 = vpack.c.b16 %v743, %v738
    %v884 = vpack.c.b16 %v744, %v739
    %v885 = vpack.c.b16 %v745, %v740
    %v886 = vpack.c.b16 %v746, %v741
    %v887 = vpack.c.b16 %v752, %v747
    %v888 = vpack.c.b16 %v753, %v748
    %v889 = vpack.c.b16 %v754, %v749
    %v890 = vpack.c.b16 %v755, %v750
    %v891 = vpack.c.b16 %v756, %v751
    %v892 = vpack.c.b16 %v762, %v757
    %v893 = vpack.c.b16 %v763, %v758
    %v894 = vpack.c.b16 %v764, %v759
    %v895 = vpack.c.b16 %v765, %v760
    %v896 = vpack.c.b16 %v766, %v761
    %v897 = vpack.c.b16 %v772, %v767
    %v898 = vpack.c.b16 %v773, %v768
    %v899 = vpack.c.b16 %v774, %v769
    %v900 = vpack.c.b16 %v775, %v770
    %v901 = vpack.c.b16 %v776, %v771
    %v902 = vpack.c.b16 %v782, %v777
    %v903 = vpack.c.b16 %v783, %v778
    %v904 = vpack.c.b16 %v784, %v779
    %v905 = vpack.c.b16 %v785, %v780
    %v906 = vpack.c.b16 %v786, %v781
    %1027 = vmatpush.bf16.msra.mxu0 %v822
    %1028 = vmatpush.bf16.msra.mxu0 %v817
    %1029 = vmatpush.bf16.msra.mxu0 %v812
    %1030 = vmatpush.bf16.msra.mxu0 %v807
    %1031 = vmatpush.bf16.msra.mxu0 %v802
    %1032 = vmatpush.bf16.msra.mxu0 %v797
    %1033 = vmatpush.bf16.msra.mxu0 %v792
    %1034 = vmatpush.bf16.msra.mxu0 %v787
    %1035 = vmatmul.bf16.gmra.mxu0 %v256
    %v1036 = vpop.f32.mrf.mxu0
    %v1037 = vadd.f32 0.0, %v1036
    %v1038 = vpop.f32.mrf.mxu0
    %v1039 = vadd.f32 0.0, %v1038
    %1040 = vdwg.mxu0
    %1041 = vmatpush.bf16.msra.mxu0 %v862
    %1042 = vmatpush.bf16.msra.mxu0 %v857
    %1043 = vmatpush.bf16.msra.mxu0 %v852
    %1044 = vmatpush.bf16.msra.mxu0 %v847
    %1045 = vmatpush.bf16.msra.mxu0 %v842
    %1046 = vmatpush.bf16.msra.mxu0 %v837
    %1047 = vmatpush.bf16.msra.mxu0 %v832
    %1048 = vmatpush.bf16.msra.mxu0 %v827
    %1049 = vmatmul.bf16.gmra.mxu0 %v257
    %v1050 = vpop.f32.mrf.mxu0
    %v1051 = vadd.f32 %v1037, %v1050
    %v1052 = vpop.f32.mrf.mxu0
    %v1053 = vadd.f32 %v1039, %v1052
    %1054 = vdwg.mxu0
    %1055 = vmatpush.bf16.msra.mxu0 %v902
    %1056 = vmatpush.bf16.msra.mxu0 %v897
    %1057 = vmatpush.bf16.msra.mxu0 %v892
    %1058 = vmatpush.bf16.msra.mxu0 %v887
    %1059 = vmatpush.bf16.msra.mxu0 %v882
    %1060 = vmatpush.bf16.msra.mxu0 %v877
    %1061 = vmatpush.bf16.msra.mxu0 %v872
    %1062 = vmatpush.bf16.msra.mxu0 %v867
    %1063 = vmatmul.bf16.gmra.mxu0 %v258
    %v1064 = vpop.f32.mrf.mxu0
    %v1065 = vadd.f32 %v1051, %v1064
    %v1066 = vpop.f32.mrf.mxu0
    %v1067 = vadd.f32 %v1053, %v1066
    %1068 = vdwg.mxu0
    %1069 = vmatpush.bf16.msra.mxu0 %v823
    %1070 = vmatpush.bf16.msra.mxu0 %v818
    %1071 = vmatpush.bf16.msra.mxu0 %v813
    %1072 = vmatpush.bf16.msra.mxu0 %v808
    %1073 = vmatpush.bf16.msra.mxu0 %v803
    %1074 = vmatpush.bf16.msra.mxu0 %v798
    %1075 = vmatpush.bf16.msra.mxu0 %v793
    %1076 = vmatpush.bf16.msra.mxu0 %v788
    %1077 = vmatmul.bf16.gmra.mxu0 %v256
    %v1078 = vpop.f32.mrf.mxu0
    %v1079 = vadd.f32 0.0, %v1078
    %v1080 = vpop.f32.mrf.mxu0
    %v1081 = vadd.f32 0.0, %v1080
    %1082 = vdwg.mxu0
    %1083 = vmatpush.bf16.msra.mxu0 %v863
    %1084 = vmatpush.bf16.msra.mxu0 %v858
    %1085 = vmatpush.bf16.msra.mxu0 %v853
    %1086 = vmatpush.bf16.msra.mxu0 %v848
    %1087 = vmatpush.bf16.msra.mxu0 %v843
    %1088 = vmatpush.bf16.msra.mxu0 %v838
    %1089 = vmatpush.bf16.msra.mxu0 %v833
    %1090 = vmatpush.bf16.msra.mxu0 %v828
    %1091 = vmatmul.bf16.gmra.mxu0 %v257
    %v1092 = vpop.f32.mrf.mxu0
    %v1093 = vadd.f32 %v1079, %v1092
    %v1094 = vpop.f32.mrf.mxu0
    %v1095 = vadd.f32 %v1081, %v1094
    %1096 = vdwg.mxu0
    %1097 = vmatpush.bf16.msra.mxu0 %v903
    %1098 = vmatpush.bf16.msra.mxu0 %v898
    %1099 = vmatpush.bf16.msra.mxu0 %v893
    %1100 = vmatpush.bf16.msra.mxu0 %v888
    %1101 = vmatpush.bf16.msra.mxu0 %v883
    %1102 = vmatpush.bf16.msra.mxu0 %v878
    %1103 = vmatpush.bf16.msra.mxu0 %v873
    %1104 = vmatpush.bf16.msra.mxu0 %v868
    %1105 = vmatmul.bf16.gmra.mxu0 %v258
    %v1106 = vpop.f32.mrf.mxu0
    %v1107 = vadd.f32 %v1093, %v1106
    %v1108 = vpop.f32.mrf.mxu0
    %v1109 = vadd.f32 %v1095, %v1108
    %1110 = vdwg.mxu0
    %1111 = vmatpush.bf16.msra.mxu0 %v824
    %1112 = vmatpush.bf16.msra.mxu0 %v819
    %1113 = vmatpush.bf16.msra.mxu0 %v814
    %1114 = vmatpush.bf16.msra.mxu0 %v809
    %1115 = vmatpush.bf16.msra.mxu0 %v804
    %1116 = vmatpush.bf16.msra.mxu0 %v799
    %1117 = vmatpush.bf16.msra.mxu0 %v794
    %1118 = vmatpush.bf16.msra.mxu0 %v789
    %1119 = vmatmul.bf16.gmra.mxu0 %v256
    %v1120 = vpop.f32.mrf.mxu0
    %v1121 = vadd.f32 0.0, %v1120
    %v1122 = vpop.f32.mrf.mxu0
    %v1123 = vadd.f32 0.0, %v1122
    %1124 = vdwg.mxu0
    %1125 = vmatpush.bf16.msra.mxu0 %v864
    %1126 = vmatpush.bf16.msra.mxu0 %v859
    %1127 = vmatpush.bf16.msra.mxu0 %v854
    %1128 = vmatpush.bf16.msra.mxu0 %v849
    %1129 = vmatpush.bf16.msra.mxu0 %v844
    %1130 = vmatpush.bf16.msra.mxu0 %v839
    %1131 = vmatpush.bf16.msra.mxu0 %v834
    %1132 = vmatpush.bf16.msra.mxu0 %v829
    %1133 = vmatmul.bf16.gmra.mxu0 %v257
    %v1134 = vpop.f32.mrf.mxu0
    %v1135 = vadd.f32 %v1121, %v1134
    %v1136 = vpop.f32.mrf.mxu0
    %v1137 = vadd.f32 %v1123, %v1136
    %1138 = vdwg.mxu0
    %1139 = vmatpush.bf16.msra.mxu0 %v904
    %1140 = vmatpush.bf16.msra.mxu0 %v899
    %1141 = vmatpush.bf16.msra.mxu0 %v894
    %1142 = vmatpush.bf16.msra.mxu0 %v889
    %1143 = vmatpush.bf16.msra.mxu0 %v884
    %1144 = vmatpush.bf16.msra.mxu0 %v879
    %1145 = vmatpush.bf16.msra.mxu0 %v874
    %1146 = vmatpush.bf16.msra.mxu0 %v869
    %1147 = vmatmul.bf16.gmra.mxu0 %v258
    %v1148 = vpop.f32.mrf.mxu0
    %v1149 = vadd.f32 %v1135, %v1148
    %v1150 = vpop.f32.mrf.mxu0
    %v1151 = vadd.f32 %v1137, %v1150
    %1152 = vdwg.mxu0
    %1153 = vmatpush.bf16.msra.mxu0 %v825
    %1154 = vmatpush.bf16.msra.mxu0 %v820
    %1155 = vmatpush.bf16.msra.mxu0 %v815
    %1156 = vmatpush.bf16.msra.mxu0 %v810
    %1157 = vmatpush.bf16.msra.mxu0 %v805
    %1158 = vmatpush.bf16.msra.mxu0 %v800
    %1159 = vmatpush.bf16.msra.mxu0 %v795
    %1160 = vmatpush.bf16.msra.mxu0 %v790
    %1161 = vmatmul.bf16.gmra.mxu0 %v256
    %v1162 = vpop.f32.mrf.mxu0
    %v1163 = vadd.f32 0.0, %v1162
    %v1164 = vpop.f32.mrf.mxu0
    %v1165 = vadd.f32 0.0, %v1164
    %1166 = vdwg.mxu0
    %1167 = vmatpush.bf16.msra.mxu0 %v865
    %1168 = vmatpush.bf16.msra.mxu0 %v860
    %1169 = vmatpush.bf16.msra.mxu0 %v855
    %1170 = vmatpush.bf16.msra.mxu0 %v850
    %1171 = vmatpush.bf16.msra.mxu0 %v845
    %1172 = vmatpush.bf16.msra.mxu0 %v840
    %1173 = vmatpush.bf16.msra.mxu0 %v835
    %1174 = vmatpush.bf16.msra.mxu0 %v830
    %1175 = vmatmul.bf16.gmra.mxu0 %v257
    %v1176 = vpop.f32.mrf.mxu0
    %v1177 = vadd.f32 %v1163, %v1176
    %v1178 = vpop.f32.mrf.mxu0
    %v1179 = vadd.f32 %v1165, %v1178
    %1180 = vdwg.mxu0
    %1181 = vmatpush.bf16.msra.mxu0 %v905
    %1182 = vmatpush.bf16.msra.mxu0 %v900
    %1183 = vmatpush.bf16.msra.mxu0 %v895
    %1184 = vmatpush.bf16.msra.mxu0 %v890
    %1185 = vmatpush.bf16.msra.mxu0 %v885
    %1186 = vmatpush.bf16.msra.mxu0 %v880
    %1187 = vmatpush.bf16.msra.mxu0 %v875
    %1188 = vmatpush.bf16.msra.mxu0 %v870
    %1189 = vmatmul.bf16.gmra.mxu0 %v258
    %v1190 = vpop.f32.mrf.mxu0
    %v1191 = vadd.f32 %v1177, %v1190
    %v1192 = vpop.f32.mrf.mxu0
    %v1193 = vadd.f32 %v1179, %v1192
    %1194 = vdwg.mxu0
    %1195 = vmatpush.bf16.msra.mxu0 %v826
    %1196 = vmatpush.bf16.msra.mxu0 %v821
    %1197 = vmatpush.bf16.msra.mxu0 %v816
    %1198 = vmatpush.bf16.msra.mxu0 %v811
    %1199 = vmatpush.bf16.msra.mxu0 %v806
    %1200 = vmatpush.bf16.msra.mxu0 %v801
    %1201 = vmatpush.bf16.msra.mxu0 %v796
    %1202 = vmatpush.bf16.msra.mxu0 %v791
    %1203 = vmatmul.bf16.gmra.mxu0 %v256
    %v1204 = vpop.f32.mrf.mxu0
    %v1205 = vadd.f32 0.0, %v1204
    %v1206 = vpop.f32.mrf.mxu0
    %v1207 = vadd.f32 0.0, %v1206
    %1208 = vdwg.mxu0
    %1209 = vmatpush.bf16.msra.mxu0 %v866
    %1210 = vmatpush.bf16.msra.mxu0 %v861
    %1211 = vmatpush.bf16.msra.mxu0 %v856
    %1212 = vmatpush.bf16.msra.mxu0 %v851
    %1213 = vmatpush.bf16.msra.mxu0 %v846
    %1214 = vmatpush.bf16.msra.mxu0 %v841
    %1215 = vmatpush.bf16.msra.mxu0 %v836
    %1216 = vmatpush.bf16.msra.mxu0 %v831
    %1217 = vmatmul.bf16.gmra.mxu0 %v257
    %v1218 = vpop.f32.mrf.mxu0
    %v1219 = vadd.f32 %v1205, %v1218
    %v1220 = vpop.f32.mrf.mxu0
    %v1221 = vadd.f32 %v1207, %v1220
    %1222 = vdwg.mxu0
    %1223 = vmatpush.bf16.msra.mxu0 %v906
    %1224 = vmatpush.bf16.msra.mxu0 %v901
    %1225 = vmatpush.bf16.msra.mxu0 %v896
    %1226 = vmatpush.bf16.msra.mxu0 %v891
    %1227 = vmatpush.bf16.msra.mxu0 %v886
    %1228 = vmatpush.bf16.msra.mxu0 %v881
    %1229 = vmatpush.bf16.msra.mxu0 %v876
    %1230 = vmatpush.bf16.msra.mxu0 %v871
    %1231 = vmatmul.bf16.gmra.mxu0 %v258
    %v1232 = vpop.f32.mrf.mxu0
    %v1233 = vadd.f32 %v1219, %v1232
    %v1234 = vpop.f32.mrf.mxu0
    %v1235 = vadd.f32 %v1221, %v1234
    %1236 = vdwg.mxu0
    %v1237 = vpack.c.bf16 %v1107, %v1065
    %v1238 = vpack.c.bf16 %v1191, %v1149
    %v1239 = vpack.c.bf16 %v1233, %v1233
    %v1240 = vpack.c.bf16 %v1109, %v1067
    %v1241 = vpack.c.bf16 %v1193, %v1151
    %v1242 = vpack.c.bf16 %v1235, %v1235
    %v1243 = vld [vmem:[%s4] sm:$0x1f]
    %v1245 = vperm.slane %v1243, 0
    %v1246 = vperm.slane %v1243, 1
    %v1247 = vperm.slane %v1243, 2
    %v1248 = vperm.slane %v1243, 3
    %v1249 = vperm.slane %v1243, 4
    %v1255 = vpack.c.bf16 %v1246, %v1245
    %v1256 = vpack.c.bf16 %v1248, %v1247
    %v1257 = vpack.c.bf16 %v1249, %v1249
    %v1261 = vunpack.c.l.b16 %v1255
    %v1262 = vunpack.c.h.b16 %v1255
    %v1263 = vunpack.c.l.b16 %v1256
    %v1264 = vunpack.c.h.b16 %v1256
    %v1265 = vunpack.c.l.b16 %v1257
    %v1266 = vpack.c.b16 %v1261, %v1261
    %v1267 = vpack.c.b16 %v1262, %v1262
    %v1268 = vpack.c.b16 %v1263, %v1263
    %v1269 = vpack.c.b16 %v1264, %v1264
    %v1270 = vpack.c.b16 %v1265, %v1265
    %v1272 = vpack.i.b16 %v1266, %v1266
    %v1274 = vperm.slane %v1272, 0
    %v1276 = vpack.i.b16 %v1267, %v1267
    %v1278 = vperm.slane %v1276, 0
    %v1280 = vpack.i.b16 %v1268, %v1268
    %v1282 = vperm.slane %v1280, 0
    %v1284 = vpack.i.b16 %v1269, %v1269
    %v1286 = vperm.slane %v1284, 0
    %v1288 = vpack.i.b16 %v1270, %v1270
    %v1290 = vperm.slane %v1288, 0
    %v1291 = vunpack.c.l.bf16 %v1237
    %v1292 = vunpack.c.h.bf16 %v1237
    %v1293 = vunpack.c.l.bf16 %v1238
    %v1294 = vunpack.c.h.bf16 %v1238
    %v1295 = vunpack.c.l.bf16 %v1239
    %v1296 = vunpack.c.l.bf16 %v1240
    %v1297 = vunpack.c.h.bf16 %v1240
    %v1298 = vunpack.c.l.bf16 %v1241
    %v1299 = vunpack.c.h.bf16 %v1241
    %v1300 = vunpack.c.l.bf16 %v1242
    %v1301 = vunpack.c.l.bf16 %v1274
    %v1302 = vunpack.c.l.bf16 %v1278
    %v1303 = vunpack.c.l.bf16 %v1282
    %v1304 = vunpack.c.l.bf16 %v1286
    %v1305 = vunpack.c.l.bf16 %v1290
    %v1306 = vadd.f32 %v1291, %v1301
    %v1307 = vadd.f32 %v1292, %v1302
    %v1308 = vadd.f32 %v1293, %v1303
    %v1309 = vadd.f32 %v1294, %v1304
    %v1310 = vadd.f32 %v1295, %v1305
    %v1311 = vadd.f32 %v1296, %v1301
    %v1312 = vadd.f32 %v1297, %v1302
    %v1313 = vadd.f32 %v1298, %v1303
    %v1314 = vadd.f32 %v1299, %v1304
    %v1315 = vadd.f32 %v1300, %v1305
    %v1316 = vpack.c.bf16 %v1307, %v1306
    %v1317 = vpack.c.bf16 %v1309, %v1308
    %v1318 = vpack.c.bf16 %v1310, %v1310
    %v1319 = vpack.c.bf16 %v1312, %v1311
    %v1320 = vpack.c.bf16 %v1314, %v1313
    %v1321 = vpack.c.bf16 %v1315, %v1315
    %v1322 = vunpack.c.l.bf16 %v1316
    %v1323 = vunpack.c.h.bf16 %v1316
    %v1324 = vunpack.c.l.bf16 %v1317
    %v1325 = vunpack.c.h.bf16 %v1317
    %v1326 = vunpack.c.l.bf16 %v1318
    %v1327 = vunpack.c.l.bf16 %v1319
    %v1328 = vunpack.c.h.bf16 %v1319
    %v1329 = vunpack.c.l.bf16 %v1320
    %v1330 = vunpack.c.h.bf16 %v1320
    %v1331 = vunpack.c.l.bf16 %v1321
    %v1332 = vmax.f32 %v1322, 0.0
    %v1333 = vmax.f32 %v1323, 0.0
    %v1334 = vmax.f32 %v1324, 0.0
    %v1335 = vmax.f32 %v1325, 0.0
    %v1336 = vmax.f32 %v1326, 0.0
    %v1337 = vmax.f32 %v1327, 0.0
    %v1338 = vmax.f32 %v1328, 0.0
    %v1339 = vmax.f32 %v1329, 0.0
    %v1340 = vmax.f32 %v1330, 0.0
    %v1341 = vmax.f32 %v1331, 0.0
    %v1342 = vpack.c.bf16 %v1333, %v1332
    %v1343 = vpack.c.bf16 %v1335, %v1334
    %v1344 = vpack.c.bf16 %v1336, %v1336
    %v1345 = vpack.c.bf16 %v1338, %v1337
    %v1346 = vpack.c.bf16 %v1340, %v1339
    %v1347 = vpack.c.bf16 %v1341, %v1341
    %v1348 = vunpack.c.l.bf16 %v1342
    %v1349 = vunpack.c.h.bf16 %v1342
    %v1350 = vunpack.c.l.bf16 %v1343
    %v1351 = vunpack.c.h.bf16 %v1343
    %v1352 = vunpack.c.l.bf16 %v1344
    %v1353 = vunpack.c.l.bf16 %v1345
    %v1354 = vunpack.c.h.bf16 %v1345
    %v1355 = vunpack.c.l.bf16 %v1346
    %v1356 = vunpack.c.h.bf16 %v1346
    %v1357 = vunpack.c.l.bf16 %v1347
    %v1358 = vld [vmem:[#allocation10] sm:$0x1f]
    %v1360 = vperm.slane %v1358, 0
    %v1361 = vperm.slane %v1358, 1
    %v1362 = vperm.slane %v1358, 2
    %v1363 = vperm.slane %v1358, 3
    %v1364 = vperm.slane %v1358, 4
    %v1370 = vmul.f32 %v1348, %v1360
    %v1371 = vmul.f32 %v1349, %v1361
    %v1372 = vmul.f32 %v1350, %v1362
    %v1373 = vmul.f32 %v1351, %v1363
    %v1374 = vmul.f32 %v1352, %v1364
    %v1375 = vmul.f32 %v1353, %v1360
    %v1376 = vmul.f32 %v1354, %v1361
    %v1377 = vmul.f32 %v1355, %v1362
    %v1378 = vmul.f32 %v1356, %v1363
    %v1379 = vmul.f32 %v1357, %v1364
    %v1380 = vadd.f32 %v1370, %v1371
    %v1381 = vadd.f32 %v1380, %v1372
    %v1382 = vadd.f32 %v1381, %v1373
    %v1383 = vadd.f32 %v1382, %v1374
    %1384 = vadd.xlane.f32.xlu0 %v1383
    %v1385 = vpop.xlane.xlu0 %1384
    %v1386 = vadd.f32 %v1375, %v1376
    %v1387 = vadd.f32 %v1386, %v1377
    %v1388 = vadd.f32 %v1387, %v1378
    %v1389 = vadd.f32 %v1388, %v1379
    %1390 = vadd.xlane.f32.xlu0 %v1389
    %v1391 = vpop.xlane.xlu0 %1390
    %s1392 = sld [smem:[#allocation2]]
    %v1393 = vstv %s1392
    %v1394 = vadd.f32 %v1385, %v1393
    %v1395 = vadd.f32 %v1391, %v1393
    %vm1396 = vcmask 7168
    %1397 = vst.msk [vmem:[%s7] sm:$0xff] %vm1396, %v1394
    %1398 = vst.msk [vmem:[%s7 + $0x8] sm:$0xff] %vm1396, %v1395
    // Predicated region
    $region50: #{tpu_custom_call.1} parent=1 // pred_check
      _
    $region51: #{tpu_custom_call.1} parent=1 // pred_check_branch
      %1400 = sbr.rel (0) target = $region53
    $region52: #{tpu_custom_call.1} parent=1 // pred_region
      _
    $region53: #{tpu_custom_call.1} parent=1 // pred_fallthru
      _
    // Predicated region
    $region54: #{tpu_custom_call.1} parent=1 // pred_check
      _
    $region55: #{tpu_custom_call.1} parent=1 // pred_check_branch
      %1402 = sbr.rel (0) target = $region57
    $region56: #{tpu_custom_call.1} parent=1 // pred_region
      _
    $region57: #{tpu_custom_call.1} parent=1 // pred_fallthru
      _
    %1403 = vsyncpa [#allocation4], 1
    %1404 = vsyncpa [#allocation6], 1
    %1405 = vsyncpa [#allocation9], 1

</llo_original>
